<compile_context>
chip_gen: v7x
topology: tpu7x:2x2x1
jax: 0.10.0
libtpu: 0.0.40
codegen_flags: <defaults>
</compile_context>

<pallas_src>
import jax
import jax.numpy as jnp
from jax.experimental import pallas as pl
from jax.experimental.pallas import tpu as pltpu


# ------------------------------ small helpers -------------------------------

def _round_up(x, m):
    return ((x + m - 1) // m) * m


def _tile_and_pad(dim, pref, mult=128):
    """Pick (tile, padded_extent) for one matmul axis.

    If the (mult-rounded) dim fits in one preferred tile -> single full-extent
    block (always legal).  Otherwise use the preferred tile (a multiple of
    mult) and pad the axis to a whole number of tiles.
    """
    padded = _round_up(dim, mult)
    if padded <= pref:
        return padded, padded
    return pref, _round_up(dim, pref)


def _pick_adjacency_dtype():
    """int8 operands on v5e/v6e (integer MXU: ~2x bf16 rate, half the bytes);
    bf16 elsewhere -- v7x's MXU has no integer mode."""
    try:
        kind = jax.devices()[0].device_kind.lower()
    except Exception:
        kind = ""
    if any(t in kind for t in ("v5 lite", "v5lite", "v5e", "v6 lite", "v6e")):
        return jnp.int8, jnp.int32
    return jnp.bfloat16, jnp.float32


# ----------------------------- Pallas kernels ------------------------------

def _proj_logits_kernel(h_ref, w_ref, o_ref):
    # VPU multiply + XLU lane reduce; kernel stays HBM-bound on reading h,
    # no dead MXU work, no (D,128) zero-padded weight DMA.
    o_ref[...] = jnp.sum(h_ref[...] * w_ref[...], axis=-1, keepdims=True)


def _sel_two_hop_kernel(a_ref, b_ref, o_ref):
    # un_g_sel tile: the output block's index map is constant over the k axis,
    # so it stays resident in VMEM -> accumulate directly into it (no scratch).
    @pl.when(pl.program_id(2) == 0)
    def _():
        o_ref[...] = jnp.zeros_like(o_ref)

    o_ref[...] = o_ref[...] + jnp.dot(a_ref[...], b_ref[...],
                                      preferred_element_type=o_ref.dtype)


# ----------------------------- kernel wrappers ------------------------------

def proj_logits(h, w, tm_pref=512):
    """z = h @ w^T  (raw logits, [N]); sigmoid + bias are handled by the caller."""
    N, D = h.shape
    tm = min(tm_pref, _round_up(N, 8))
    grid = (pl.cdiv(N, tm),)
    w_row = jnp.asarray(w).reshape(1, D).astype(h.dtype)

    out = pl.pallas_call(
        _proj_logits_kernel,
        out_shape=jax.ShapeDtypeStruct((N, 1), jnp.float32),
        grid_spec=pltpu.PrefetchScalarGridSpec(
            num_scalar_prefetch=0,
            grid=grid,
            in_specs=[
                pl.BlockSpec((tm, D), lambda i: (i, 0)),
                pl.BlockSpec((1, D), lambda i: (0, 0)),
            ],
            out_specs=pl.BlockSpec((tm, 1), lambda i: (i, 0)),
        ),
        compiler_params=pltpu.CompilerParams(
            dimension_semantics=("parallel",)),
        cost_estimate=pl.CostEstimate(
            flops=2 * N * D, transcendentals=0,
            bytes_accessed=N * D * 4 + D * 4 + N * 4),
    )(h, w_row)
    return out[:, 0]


def sel_two_hop(g_rows, g_cols, tm, tn, tk, acc_dtype):
    """un_g_sel = g_rows @ g_cols (int8/bf16 operands, i32/f32 accumulation)."""
    M, K = g_rows.shape
    K2, Nn = g_cols.shape
    assert K == K2 and M % tm == 0 and Nn % tn == 0 and K % tk == 0

    op_bytes = jnp.dtype(g_rows.dtype).itemsize
    flops = 2 * M * Nn * K
    bytes_accessed = (M * K + K * Nn) * op_bytes + M * Nn * 4

    return pl.pallas_call(
        _sel_two_hop_kernel,
        out_shape=jax.ShapeDtypeStruct((M, Nn), acc_dtype),
        grid_spec=pltpu.PrefetchScalarGridSpec(
            num_scalar_prefetch=0,
            grid=(M // tm, Nn // tn, K // tk),
            in_specs=[
                pl.BlockSpec((tm, tk), lambda i, j, kk: (i, kk)),
                pl.BlockSpec((tk, tn), lambda i, j, kk: (kk, j)),
            ],
            out_specs=pl.BlockSpec((tm, tn), lambda i, j, kk: (i, j)),
        ),
        compiler_params=pltpu.CompilerParams(
            dimension_semantics=("parallel", "parallel", "arbitrary"),
            vmem_limit_bytes=32 * 1024 * 1024,
        ),
        cost_estimate=pl.CostEstimate(
            flops=flops, transcendentals=0, bytes_accessed=bytes_accessed),
    )(g_rows, g_cols)


def gather_scale(h, values, idx, rows_pref=512):
    """new_h = h[idx, :] * values[:, None]  (chunked, vectorized in-VMEM gather)."""
    N, D = h.shape
    num_sel = idx.shape[0]
    rows = min(rows_pref, _round_up(num_sel, 8))
    s_pad = _round_up(num_sel, rows)

    idx_pad = jnp.zeros((s_pad, 1), jnp.int32).at[:num_sel, 0].set(
        idx.astype(jnp.int32))
    v_pad = jnp.zeros((s_pad, 1), values.dtype).at[:num_sel, 0].set(values)

    def take_kernel(idx_ref, v_ref, h_ref, o_ref):
        # Single vectorized row gather for the whole chunk (no per-row loop).
        sel = jnp.take(h_ref[...], idx_ref[...][:, 0], axis=0,
                       mode="promise_in_bounds")
        o_ref[...] = (sel * v_ref[...]).astype(o_ref.dtype)

    def onehot_kernel(idx_ref, v_ref, h_ref, o_ref):
        # Fallback: gather expressed as a one-hot MXU matmul (always lowers).
        cols = jax.lax.broadcasted_iota(jnp.int32, (rows, N), 1)
        onehot = (cols == idx_ref[...]).astype(h_ref.dtype)
        sel = jnp.dot(onehot, h_ref[...], preferred_element_type=jnp.float32)
        o_ref[...] = (sel * v_ref[...]).astype(o_ref.dtype)

    def run(kernel):
        return pl.pallas_call(
            kernel,
            out_shape=jax.ShapeDtypeStruct((s_pad, D), h.dtype),
            grid_spec=pltpu.PrefetchScalarGridSpec(
                num_scalar_prefetch=0,
                grid=(s_pad // rows,),
                in_specs=[
                    pl.BlockSpec((rows, 1), lambda c: (c, 0)),
                    pl.BlockSpec((rows, 1), lambda c: (c, 0)),
                    # TODO(synk): h kept resident in VMEM (single block,
                    # constant index map); for very large N switch to
                    # memory_space=pl.ANY + manual double-buffered row DMAs.
                    pl.BlockSpec((N, D), lambda c: (0, 0)),
                ],
                out_specs=pl.BlockSpec((rows, D), lambda c: (c, 0)),
            ),
            compiler_params=pltpu.CompilerParams(
                dimension_semantics=("parallel",)),
            cost_estimate=pl.CostEstimate(
                flops=s_pad * D, transcendentals=0,
                bytes_accessed=(N * D + 2 * s_pad * D) * 4 + s_pad * 8),
        )(idx_pad, v_pad, h)

    try:
        out = run(take_kernel)
    except Exception:
        # Vectorized take did not lower on this chip/toolchain -> one-hot MXU.
        out = run(onehot_kernel)
    return out[:num_sel]


def build_gathered_adjacency(edge_index, idx, num_nodes, num_sel,
                             m_pad, k_pad, n_pad, op_dtype):
    """Scatter edges directly into g[idx, :] (m_pad x k_pad) and g[:, idx]
    (k_pad x n_pad), zero-padded; the dense N x N adjacency is never built.
    Duplicate edges sum (matches torch.sparse(...).to_dense()).

    Only the NONZERO PATTERN of g_rows @ g_cols is consumed downstream, so
    duplicate-edge counts are clipped to the operand dtype's exact range
    (127 for int8); positivity -- hence nonzero-ness -- is preserved exactly.
    """
    inv = jnp.full((num_nodes,), -1, jnp.int32).at[idx].set(
        jnp.arange(num_sel, dtype=jnp.int32))
    src = edge_index[0]
    dst = edge_index[1]

    r = inv[src]
    rv = (r >= 0)
    g_rows = jnp.zeros((m_pad, k_pad), jnp.float32).at[
        jnp.where(rv, r, 0), dst].add(rv.astype(jnp.float32))

    c = inv[dst]
    cv = (c >= 0)
    g_cols = jnp.zeros((k_pad, n_pad), jnp.float32).at[
        src, jnp.where(cv, c, 0)].add(cv.astype(jnp.float32))

    if op_dtype == jnp.int8:
        g_rows = jnp.clip(g_rows, 0, 127)
        g_cols = jnp.clip(g_cols, 0, 127)
    return g_rows.astype(op_dtype), g_cols.astype(op_dtype)


# ------------------------- GraphUnetPool forward ----------------------------

def graph_unet_pool_forward(h, edge_index, edge_attr, batch, k, proj_w, proj_b):
    """Reproduces GraphUnetPool.forward + top_k_graph.

    Returns (new_h, new_edge_index, new_edge_attr, new_batch, idx).
    """
    del edge_attr  # overwritten by ones() in the reference implementation
    N, D = h.shape

    # TODO(synk): nn.Dropout with p > 0 not implemented; the module uses
    # Identity when drop_ratio == 0 (eval-equivalent), which is what we do.

    # Kernel A: raw projection logits; sigmoid is strictly monotonic so top_k
    # on logits selects the same nodes -- apply sigmoid (+ bias) only to the
    # num_sel winners.
    logits = proj_logits(h, proj_w)                           # [N]
    num_sel = max(2, int(k * N))
    top_logits, idx = jax.lax.top_k(logits, num_sel)          # descending, like torch.topk
    b_scalar = jnp.asarray(proj_b, jnp.float32).reshape(-1)[0]
    values = jax.nn.sigmoid(top_logits + b_scalar)

    # Kernel C: new_h = h[idx, :] * values[:, None]
    new_h = gather_scale(h, values, idx)

    # edge_attr = ones(E) (original edge count, as in the reference)
    E = edge_index.shape[1]
    new_edge_attr = jnp.ones((E,), jnp.float32)

    # Kernel B: fused two-hop + selection  un_g_sel = g[idx, :] @ g[:, idx]
    tm, m_pad = _tile_and_pad(num_sel, 512)
    tn, n_pad = _tile_and_pad(num_sel, 512)
    tk, k_pad = _tile_and_pad(N, 512)
    op_dtype, acc_dtype = _pick_adjacency_dtype()
    g_rows, g_cols = build_gathered_adjacency(
        edge_index, idx, N, num_sel, m_pad, k_pad, n_pad, op_dtype)
    try:
        un_g_sel = sel_two_hop(g_rows, g_cols, tm, tn, tk, acc_dtype)
    except Exception:
        if op_dtype == jnp.bfloat16:
            raise
        # Integer MXU path unavailable on this chip/toolchain -> bf16 operands.
        g_rows, g_cols = build_gathered_adjacency(
            edge_index, idx, N, num_sel, m_pad, k_pad, n_pad, jnp.bfloat16)
        un_g_sel = sel_two_hop(g_rows, g_cols, tm, tn, tk, jnp.float32)
    un_g_sel = un_g_sel[:num_sel, :num_sel]

    # TODO(synk): torch.nonzero has a dynamic output shape; emulate with a
    # statically padded jnp.nonzero (pad value -1 marks non-edges).
    rows, cols = jnp.nonzero(un_g_sel, size=num_sel * num_sel, fill_value=-1)
    new_edge_index = jnp.stack([rows, cols], axis=0)

    new_batch = batch[idx]
    return new_h, new_edge_index, new_edge_attr, new_batch, idx


# ----------------------------------- main -----------------------------------

if __name__ == "__main__":
    key = jax.random.PRNGKey(0)
    N, D, E = 64, 32, 128        # nodes, in_dim, edges
    k = 0.5                      # pooling ratio -> keeps max(2, int(k*N)) = 32 nodes

    k1, k2, k3, k4 = jax.random.split(key, 4)
    h = jax.random.normal(k1, (N, D), dtype=jnp.float32)
    edge_index = jax.random.randint(k2, (2, E), 0, N, dtype=jnp.int32)
    edge_attr = jnp.ones((E,), jnp.float32)
    batch = jnp.zeros((N,), jnp.int32)

    # nn.Linear(in_dim, 1): weight [1, in_dim], bias [1] -- deterministic init
    proj_w = jax.random.normal(k3, (1, D), dtype=jnp.float32) / jnp.sqrt(D)
    proj_b = jax.random.normal(k4, (1, 1), dtype=jnp.float32) * 0.01

    outs = graph_unet_pool_forward(h, edge_index, edge_attr, batch, k,
                                   proj_w, proj_b)
    for o in outs:
        jax.block_until_ready(o)

    new_h, new_edge_index, new_edge_attr, new_batch, idx = outs
    num_sel = max(2, int(k * N))
    assert new_h.shape == (num_sel, D)
    assert new_edge_index.shape == (2, num_sel * num_sel)
    assert idx.shape == (num_sel,)
    print("KERNEL_OK")
</pallas_src>

<mosaic_0001>
module attributes {stable_mosaic.version = 11 : i64} {
  func.func @_proj_logits_kernel(%arg0: i32, %arg1: memref<64x32xf32, #tpu.memory_space<vmem>>, %arg2: memref<1x32xf32, #tpu.memory_space<vmem>>, %arg3: memref<64x1xf32, #tpu.memory_space<vmem>>) attributes {dimension_semantics = [#tpu.dimension_semantics<parallel>], iteration_bounds = array<i64: 1>, scalar_prefetch = 0 : i64, scratch_operands = 0 : i64, tpu.core_type = #tpu.core_type<tc>, window_params = [{transform_indices = @transform_0, window_bounds = array<i64: 64, 32>}, {pipeline_mode = #tpu.pipeline_mode<synchronous>, transform_indices = @transform_1, window_bounds = array<i64: 1, 32>}, {transform_indices = @transform_2, window_bounds = array<i64: 64, 1>}]} {
    %c0 = arith.constant 0 : index
    %c0_0 = arith.constant 0 : index
    %0 = vector.load %arg1[%c0, %c0_0] : memref<64x32xf32, #tpu.memory_space<vmem>>, vector<64x32xf32>
    %c0_1 = arith.constant 0 : index
    %c0_2 = arith.constant 0 : index
    %1 = vector.load %arg2[%c0_1, %c0_2] : memref<1x32xf32, #tpu.memory_space<vmem>>, vector<1x32xf32>
    %2 = vector.broadcast %1 : vector<1x32xf32> to vector<64x32xf32>
    %3 = arith.mulf %0, %2 : vector<64x32xf32>
    %cst = arith.constant dense<0.000000e+00> : vector<64xf32>
    %4 = vector.multi_reduction <add>, %3, %cst [1] : vector<64x32xf32> to vector<64xf32>
    %5 = vector.shape_cast %4 : vector<64xf32> to vector<64x1xf32>
    %c0_3 = arith.constant 0 : index
    %c0_4 = arith.constant 0 : index
    %6 = vector.load %arg3[%c0_3, %c0_4] : memref<64x1xf32, #tpu.memory_space<vmem>>, vector<64x1xf32>
    tpu.vector_store %arg3[%c0_3, %c0_4], %5 {strides = array<i32>} : memref<64x1xf32, #tpu.memory_space<vmem>>, vector<64x1xf32>,
    return
  }
  func.func @transform_0(%arg0: i32) -> (i32, i32) {
    %c0_i32 = arith.constant 0 : i32
    %c0_i32_0 = arith.constant 0 : i32
    return %arg0, %c0_i32 : i32, i32
  }
  func.func @transform_1(%arg0: i32) -> (i32, i32) {
    %c0_i32 = arith.constant 0 : i32
    %c0_i32_0 = arith.constant 0 : i32
    %c0_i32_1 = arith.constant 0 : i32
    return %c0_i32, %c0_i32_0 : i32, i32
  }
  func.func @transform_2(%arg0: i32) -> (i32, i32) {
    %c0_i32 = arith.constant 0 : i32
    %c0_i32_0 = arith.constant 0 : i32
    return %arg0, %c0_i32 : i32, i32
  }
}

</mosaic_0001>

<llo_original>
// kernel: tpu_custom_call.1
$region0: #{tpu_custom_call.1}
  #allocation0 [shape = 'u32[]', space=smem, size = 0x4, offset = 0x4, fixed_abs, tag = 'smem constant byte address 0x4 - core index']
  #allocation1 [shape = 'u32[144,128]{1,0:T(1,128)}', space=vmem, size = 0x12000, scoped, tag = 'internal scratch']
  %s0 = inlined_call_operand.vmem [shape: f32[64,32], index: 0, kind: input, shape index: {}]
  %s1 = inlined_call_operand.vmem [shape: f32[1,32], index: 1, kind: input, shape index: {}]
  %s2 = inlined_call_operand.vmem [shape: f32[64,1], index: 2, kind: output, shape index: {}]
  %s3 = sld [smem:[#allocation0]]
  $region18: #{tpu_custom_call.1} parent=0
    _
  %s5 = ssub.s32 1, %s3
  %s6 = scalar_select 0, %s5, %s3
  // Predicated region
  $region2: #{tpu_custom_call.1} parent=0 // pred_check
    _
  $region3: #{tpu_custom_call.1} parent=0 // pred_check_branch
    %8 = sbr.rel (0) target = $region5
  $region4: #{tpu_custom_call.1} parent=0 // pred_region
    _
  $region5: #{tpu_custom_call.1} parent=0 // pred_fallthru
    _
  // Predicated region
  $region6: #{tpu_custom_call.1} parent=0 // pred_check
    _
  $region7: #{tpu_custom_call.1} parent=0 // pred_check_branch
    %10 = sbr.rel (0) target = $region9
  $region8: #{tpu_custom_call.1} parent=0 // pred_region
    _
  $region9: #{tpu_custom_call.1} parent=0 // pred_fallthru
    _
  %v11 = vld [vmem:[%s0] sm:$0xff]
  %v12 = vld [vmem:[%s0 + $0x8] sm:$0xff]
  %v13 = vld [vmem:[%s0 + $0x10] sm:$0xff]
  %v14 = vld [vmem:[%s0 + $0x18] sm:$0xff]
  %v15 = vld [vmem:[%s0 + $0x20] sm:$0xff]
  %v16 = vld [vmem:[%s0 + $0x28] sm:$0xff]
  %v17 = vld [vmem:[%s0 + $0x30] sm:$0xff]
  %v18 = vld [vmem:[%s0 + $0x38] sm:$0xff]
  %v19 = vld [vmem:[%s1] sm:$0x1]
  %v21 = vlaneseq
  %v22 = vshrl.u32 %v21, 7
  %v23 = vsub.s32 0, %v22
  %v24 = vrot.slane %v19, %v23
  %v26 = vmul.f32 %v11, %v24
  %v27 = vmul.f32 %v12, %v24
  %v28 = vmul.f32 %v13, %v24
  %v29 = vmul.f32 %v14, %v24
  %v30 = vmul.f32 %v15, %v24
  %v31 = vmul.f32 %v16, %v24
  %v32 = vmul.f32 %v17, %v24
  %v33 = vmul.f32 %v18, %v24
  %vm34 = vcmask 261120
  %v35 = vsel %vm34, %v26, 0.0
  %36 = vadd.xlane.f32.xlu0 %v35
  %v37 = vpop.xlane.xlu0 %36
  %v38 = vsel %vm34, %v27, 0.0
  %39 = vadd.xlane.f32.xlu0 %v38
  %v40 = vpop.xlane.xlu0 %39
  %v41 = vsel %vm34, %v28, 0.0
  %42 = vadd.xlane.f32.xlu0 %v41
  %v43 = vpop.xlane.xlu0 %42
  %v44 = vsel %vm34, %v29, 0.0
  %45 = vadd.xlane.f32.xlu0 %v44
  %v46 = vpop.xlane.xlu0 %45
  %v47 = vsel %vm34, %v30, 0.0
  %48 = vadd.xlane.f32.xlu0 %v47
  %v49 = vpop.xlane.xlu0 %48
  %v50 = vsel %vm34, %v31, 0.0
  %51 = vadd.xlane.f32.xlu0 %v50
  %v52 = vpop.xlane.xlu0 %51
  %v53 = vsel %vm34, %v32, 0.0
  %54 = vadd.xlane.f32.xlu0 %v53
  %v55 = vpop.xlane.xlu0 %54
  %v56 = vsel %vm34, %v33, 0.0
  %57 = vadd.xlane.f32.xlu0 %v56
  %v58 = vpop.xlane.xlu0 %57
  %vm59 = vcmask 7168
  %60 = vst.msk [vmem:[%s2] sm:$0xff] %vm59, %v37
  %61 = vst.msk [vmem:[%s2 + $0x8] sm:$0xff] %vm59, %v40
  %62 = vst.msk [vmem:[%s2 + $0x10] sm:$0xff] %vm59, %v43
  %63 = vst.msk [vmem:[%s2 + $0x18] sm:$0xff] %vm59, %v46
  %64 = vst.msk [vmem:[%s2 + $0x20] sm:$0xff] %vm59, %v49
  %65 = vst.msk [vmem:[%s2 + $0x28] sm:$0xff] %vm59, %v52
  %66 = vst.msk [vmem:[%s2 + $0x30] sm:$0xff] %vm59, %v55
  %67 = vst.msk [vmem:[%s2 + $0x38] sm:$0xff] %vm59, %v58
  // Predicated region
  $region10: #{tpu_custom_call.1} parent=0 // pred_check
    _
  $region11: #{tpu_custom_call.1} parent=0 // pred_check_branch
    %69 = sbr.rel (0) target = $region13
  $region12: #{tpu_custom_call.1} parent=0 // pred_region
    _
  $region13: #{tpu_custom_call.1} parent=0 // pred_fallthru
    _
  // Predicated region
  $region14: #{tpu_custom_call.1} parent=0 // pred_check
    _
  $region15: #{tpu_custom_call.1} parent=0 // pred_check_branch
    %71 = sbr.rel (0) target = $region17
  $region16: #{tpu_custom_call.1} parent=0 // pred_region
    _
  $region17: #{tpu_custom_call.1} parent=0 // pred_fallthru
    _

</llo_original>
